<compile_context>
chip_gen: v6e
topology: v6e:2x2x1
jax: 0.10.0
libtpu: 0.0.40
codegen_flags: <defaults>
</compile_context>

<pallas_src>
import functools

import jax
import jax.numpy as jnp
from jax import lax
from jax.experimental import pallas as pl
from jax.experimental.pallas import tpu as pltpu

NEG_INF = -1e30  # additive-mask sentinel; keep in f32, applied before any bf16 cast


# ---------------------------------------------------------------------------
# Kernel 1: fused head projection.
#   xp   = x @ [W | W_h @ a_dst_h]   -> [TM, heads*f_out + heads]
#   asrc = a_src_blk . xp_feat^T     -> [heads, TM]   (lane-oriented source scores)
# ---------------------------------------------------------------------------
def _project_kernel(x_ref, w_ext_ref, a_src_blk_ref, xp_ref, asrc_ref, *, f_tot):
    xp = jnp.dot(x_ref[...], w_ext_ref[...], preferred_element_type=jnp.float32)
    xp_ref[...] = xp
    asrc_ref[...] = lax.dot_general(
        a_src_blk_ref[...], xp[:, :f_tot],
        (((1,), (1,)), ((), ())), preferred_element_type=jnp.float32)


# ---------------------------------------------------------------------------
# Kernel 2: masked softmax attention + aggregation + bias + activation,
# tiled over destination-row blocks.
# ---------------------------------------------------------------------------
def _attend_kernel(xp_src_ref, asrc_ref, xp_dst_ref, mask_ref, bias_ref,
                   out_ref, *, heads, f_out, negative_slope, activation):
    f_tot = heads * f_out
    mask = mask_ref[...]                                         # [TM, N] additive
    for h in range(heads):                                       # static & small
        feat_src = xp_src_ref[:, h * f_out:(h + 1) * f_out]      # [N, f_out]
        alpha_dst = xp_dst_ref[:, f_tot + h:f_tot + h + 1]       # [TM, 1]
        alpha_src = asrc_ref[h:h + 1, :]                         # [1, N]
        e = alpha_dst + alpha_src                                 # [TM, N]
        e = jnp.where(e > 0, e, negative_slope * e)               # LeakyReLU(0.2)
        logits = e + mask                                         # mask non-edges
        m = jnp.max(logits, axis=1, keepdims=True)
        p = jnp.exp(logits - m)
        denom = jnp.sum(p, axis=1, keepdims=True)
        att = p * pl.reciprocal(denom, approx=True)               # softmax over j
        # bf16 MXU operands, f32 accumulate; write the head directly into its
        # output lane slice (no concatenate, no extra materialization).
        out_ref[:, h * f_out:(h + 1) * f_out] = jnp.dot(
            att.astype(jnp.bfloat16), feat_src.astype(jnp.bfloat16),
            preferred_element_type=jnp.float32)
    y = out_ref[...] + bias_ref[...]
    if activation == "relu":
        y = jnp.maximum(y, 0.0)
    elif activation == "log_softmax":                             # over dim=1
        m = jnp.max(y, axis=1, keepdims=True)
        y = y - (m + jnp.log(jnp.sum(jnp.exp(y - m), axis=1, keepdims=True)))
    out_ref[...] = y


def _pick_tm(n):
    # Row-block size: whole graph when small, else 256 (multiple of 8 and 128;
    # keeps double-buffered [TM, N] mask slabs comfortably inside scoped VMEM
    # on v5e/v6e and under v7x's 64 MiB physical VMEM).
    return n if n <= 256 else 256


def gat_layer(x, mask, w, a_src, a_dst, bias, *, heads, f_out, activation):
    n, f_in = x.shape
    f_tot = heads * f_out
    f_ext = f_tot + heads
    tm = _pick_tm(n)
    grid = (pl.cdiv(n, tm),)

    # Fold alpha_dst into the projection weights: extra column h = W_h @ a_dst[h],
    # so the destination scores come out of the same MXU pass as the features.
    w_r = w.reshape(f_in, heads, f_out)
    dst_cols = jnp.einsum("fhd,hd->fh", w_r, a_dst)               # [F_in, heads]
    w_ext = jnp.concatenate([w, dst_cols], axis=1)                # [F_in, f_ext]

    # Block layout of a_src so ONE dot_general yields all heads' source scores
    # lane-oriented: a_src_blk[h, h*f_out:(h+1)*f_out] = a_src[h].
    a_src_blk = jnp.zeros((heads, f_tot), jnp.float32)
    for h in range(heads):
        a_src_blk = a_src_blk.at[h, h * f_out:(h + 1) * f_out].set(a_src[h])

    xp, asrc = pl.pallas_call(
        functools.partial(_project_kernel, f_tot=f_tot),
        grid=grid,
        in_specs=[
            pl.BlockSpec((tm, f_in), lambda i: (i, 0)),           # x rows
            pl.BlockSpec((f_in, f_ext), lambda i: (0, 0)),        # W_ext (full)
            pl.BlockSpec((heads, f_tot), lambda i: (0, 0)),       # a_src block
        ],
        out_specs=(
            pl.BlockSpec((tm, f_ext), lambda i: (i, 0)),
            pl.BlockSpec((heads, tm), lambda i: (0, i)),
        ),
        out_shape=(
            jax.ShapeDtypeStruct((n, f_ext), jnp.float32),
            jax.ShapeDtypeStruct((heads, n), jnp.float32),
        ),
        compiler_params=pltpu.CompilerParams(
            dimension_semantics=("parallel",)),
    )(x, w_ext, a_src_blk)

    out = pl.pallas_call(
        functools.partial(_attend_kernel, heads=heads, f_out=f_out,
                          negative_slope=0.2, activation=activation),
        grid=grid,
        in_specs=[
            pl.BlockSpec((n, f_ext), lambda i: (0, 0)),           # sources (full)
            pl.BlockSpec((heads, n), lambda i: (0, 0)),           # alpha_src (full)
            pl.BlockSpec((tm, f_ext), lambda i: (i, 0)),          # destination rows
            pl.BlockSpec((tm, n), lambda i: (i, 0)),              # mask row slab
            pl.BlockSpec((1, f_tot), lambda i: (0, 0)),           # bias
        ],
        out_specs=pl.BlockSpec((tm, f_tot), lambda i: (i, 0)),
        out_shape=jax.ShapeDtypeStruct((n, f_tot), jnp.float32),
        compiler_params=pltpu.CompilerParams(
            dimension_semantics=("parallel",)),
        # TODO(synk): at realistic N, set vmem_limit_bytes and shrink TM for
        # v7x's 64 MiB VMEM so 2x-buffered [TM, N] mask slabs still fit.
    )(xp, asrc, xp, mask, bias)
    return out


def init_gat_conv_params(key, f_in, f_out, heads):
    k1, k2, k3 = jax.random.split(key, 3)
    limit = (6.0 / (f_in + heads * f_out)) ** 0.5                 # glorot-ish
    return dict(
        w=jax.random.uniform(k1, (f_in, heads * f_out), jnp.float32,
                             -limit, limit),
        a_src=jax.random.uniform(k2, (heads, f_out), jnp.float32, -limit, limit),
        a_dst=jax.random.uniform(k3, (heads, f_out), jnp.float32, -limit, limit),
        bias=jnp.zeros((1, heads * f_out), jnp.float32),
    )


def init_gatnet_params(key, num_node_features, hidden, num_classes, heads):
    k1, k2 = jax.random.split(key)
    return dict(
        conv1=init_gat_conv_params(k1, num_node_features, hidden, heads),
        conv2=init_gat_conv_params(k2, hidden * heads, num_classes, 1),
    )


def build_additive_mask(edge_index, num_nodes):
    # mask[i, j] = 0 iff edge j -> i exists (or i == j, GATConv self-loops),
    # else -1e30.  Note: duplicate edges collapse to a single entry (dense
    # adjacency), unlike PyG's edge-list softmax on multigraphs.
    src, dst = edge_index[0], edge_index[1]
    adj = jnp.zeros((num_nodes, num_nodes), jnp.float32)
    adj = adj.at[dst, src].set(1.0)
    adj = jnp.maximum(adj, jnp.eye(num_nodes, dtype=jnp.float32))
    return jnp.where(adj > 0, 0.0, NEG_INF).astype(jnp.float32)


def gatnet_forward(params, x, edge_index, *, hidden, num_classes, heads):
    n = x.shape[0]
    mask = build_additive_mask(edge_index, n)                     # built once
    p1, p2 = params["conv1"], params["conv2"]
    # conv1 + ReLU (fused in-kernel)
    h1 = gat_layer(x, mask, p1["w"], p1["a_src"], p1["a_dst"], p1["bias"],
                   heads=heads, f_out=hidden, activation="relu")
    # TODO(synk): F.dropout is identity in eval mode; training-mode dropout
    # (pltpu.prng_random_bits mask) not implemented here.
    # conv2 + log_softmax(dim=1) (fused in-kernel)
    out = gat_layer(h1, mask, p2["w"], p2["a_src"], p2["a_dst"], p2["bias"],
                    heads=1, f_out=num_classes, activation="log_softmax")
    return out


if __name__ == "__main__":
    key = jax.random.PRNGKey(0)
    num_nodes = 16
    num_node_features = 8
    hidden = 8
    heads = 2
    num_classes = 4
    num_edges = 40

    k_x, k_src, k_dst, k_params = jax.random.split(key, 4)
    x = jax.random.normal(k_x, (num_nodes, num_node_features), jnp.float32)
    edge_index = jnp.stack([
        jax.random.randint(k_src, (num_edges,), 0, num_nodes),
        jax.random.randint(k_dst, (num_edges,), 0, num_nodes),
    ]).astype(jnp.int32)

    params = init_gatnet_params(k_params, num_node_features, hidden,
                                num_classes, heads)

    out = gatnet_forward(params, x, edge_index,
                         hidden=hidden, num_classes=num_classes, heads=heads)
    out = jax.block_until_ready(out)

    # sanity: log_softmax rows must exponentiate-sum to 1
    row_sums = jnp.exp(out).sum(axis=1)
    assert out.shape == (num_nodes, num_classes)
    assert bool(jnp.all(jnp.abs(row_sums - 1.0) < 1e-4))
    assert bool(jnp.all(jnp.isfinite(out)))
    print("KERNEL_OK")
</pallas_src>

<mosaic_0001>
module attributes {stable_mosaic.version = 11 : i64} {
  func.func @_project_kernel(%arg0: i32, %arg1: memref<16x8xf32, #tpu.memory_space<vmem>>, %arg2: memref<8x18xf32, #tpu.memory_space<vmem>>, %arg3: memref<2x16xf32, #tpu.memory_space<vmem>>, %arg4: memref<16x18xf32, #tpu.memory_space<vmem>>, %arg5: memref<2x16xf32, #tpu.memory_space<vmem>>) attributes {dimension_semantics = [#tpu.dimension_semantics<parallel>], iteration_bounds = array<i64: 1>, scalar_prefetch = 0 : i64, scratch_operands = 0 : i64, tpu.core_type = #tpu.core_type<tc>, window_params = [{transform_indices = @transform_0, window_bounds = array<i64: 16, 8>}, {pipeline_mode = #tpu.pipeline_mode<synchronous>, transform_indices = @transform_1, window_bounds = array<i64: 8, 18>}, {pipeline_mode = #tpu.pipeline_mode<synchronous>, transform_indices = @transform_2, window_bounds = array<i64: 2, 16>}, {transform_indices = @transform_3, window_bounds = array<i64: 16, 18>}, {transform_indices = @transform_4, window_bounds = array<i64: 2, 16>}]} {
    %c0 = arith.constant 0 : index
    %c0_0 = arith.constant 0 : index
    %0 = vector.load %arg1[%c0, %c0_0] : memref<16x8xf32, #tpu.memory_space<vmem>>, vector<16x8xf32>
    %c0_1 = arith.constant 0 : index
    %c0_2 = arith.constant 0 : index
    %1 = vector.load %arg2[%c0_1, %c0_2] : memref<8x18xf32, #tpu.memory_space<vmem>>, vector<8x18xf32>
    %cst = arith.constant dense<0.000000e+00> : vector<16x18xf32>
    %2 = tpu.matmul %0, %1, %cst {dimension_numbers = #tpu.dot_dimension_numbers<[1], [0], [0], [1], [0, 0, 1, 1], [], []>} : vector<16x8xf32>, vector<8x18xf32>, vector<16x18xf32> -> vector<16x18xf32>
    %c0_3 = arith.constant 0 : index
    %c0_4 = arith.constant 0 : index
    %3 = vector.load %arg4[%c0_3, %c0_4] : memref<16x18xf32, #tpu.memory_space<vmem>>, vector<16x18xf32>
    tpu.vector_store %arg4[%c0_3, %c0_4], %2 {strides = array<i32>} : memref<16x18xf32, #tpu.memory_space<vmem>>, vector<16x18xf32>,
    %c0_5 = arith.constant 0 : index
    %c0_6 = arith.constant 0 : index
    %4 = vector.load %arg3[%c0_5, %c0_6] : memref<2x16xf32, #tpu.memory_space<vmem>>, vector<2x16xf32>
    %5 = vector.extract_strided_slice %2 {offsets = [0, 0], sizes = [16, 16], strides = [1, 1]} : vector<16x18xf32> to vector<16x16xf32>
    %cst_7 = arith.constant dense<0.000000e+00> : vector<2x16xf32>
    %6 = tpu.matmul %4, %5, %cst_7 {dimension_numbers = #tpu.dot_dimension_numbers<[1], [1], [0], [0], [0, 0, 1, 0], [], []>} : vector<2x16xf32>, vector<16x16xf32>, vector<2x16xf32> -> vector<2x16xf32>
    %c0_8 = arith.constant 0 : index
    %c0_9 = arith.constant 0 : index
    %7 = vector.load %arg5[%c0_8, %c0_9] : memref<2x16xf32, #tpu.memory_space<vmem>>, vector<2x16xf32>
    tpu.vector_store %arg5[%c0_8, %c0_9], %6 {strides = array<i32>} : memref<2x16xf32, #tpu.memory_space<vmem>>, vector<2x16xf32>,
    return
  }
  func.func @transform_0(%arg0: i32) -> (i32, i32) {
    %c0_i32 = arith.constant 0 : i32
    %c0_i32_0 = arith.constant 0 : i32
    return %arg0, %c0_i32 : i32, i32
  }
  func.func @transform_1(%arg0: i32) -> (i32, i32) {
    %c0_i32 = arith.constant 0 : i32
    %c0_i32_0 = arith.constant 0 : i32
    %c0_i32_1 = arith.constant 0 : i32
    return %c0_i32, %c0_i32_0 : i32, i32
  }
  func.func @transform_2(%arg0: i32) -> (i32, i32) {
    %c0_i32 = arith.constant 0 : i32
    %c0_i32_0 = arith.constant 0 : i32
    %c0_i32_1 = arith.constant 0 : i32
    return %c0_i32, %c0_i32_0 : i32, i32
  }
  func.func @transform_3(%arg0: i32) -> (i32, i32) {
    %c0_i32 = arith.constant 0 : i32
    %c0_i32_0 = arith.constant 0 : i32
    return %arg0, %c0_i32 : i32, i32
  }
  func.func @transform_4(%arg0: i32) -> (i32, i32) {
    %c0_i32 = arith.constant 0 : i32
    %c0_i32_0 = arith.constant 0 : i32
    return %c0_i32, %arg0 : i32, i32
  }
}

</mosaic_0001>

<llo_original>
// kernel: tpu_custom_call.1
$region0: #{tpu_custom_call.1}
  #allocation0 [shape = 'u32[]', space=smem, size = 0x4, offset = 0x4, fixed_abs, tag = 'smem constant byte address 0x4 - core index']
  #allocation1 [shape = 'u32[144,128]{1,0:T(1,128)}', space=vmem, size = 0x12000, scoped, tag = 'internal scratch']
  %s0 = inlined_call_operand.vmem [shape: f32[16,8], index: 0, kind: input, shape index: {}]
  %s1 = inlined_call_operand.vmem [shape: f32[8,18], index: 1, kind: input, shape index: {}]
  %s2 = inlined_call_operand.vmem [shape: f32[2,16], index: 2, kind: input, shape index: {}]
  %s3 = inlined_call_operand.hbm [shape: f32[16,18], index: 3, kind: output, shape index: {0}]
  %s4 = inlined_call_operand.hbm [shape: f32[2,16], index: 4, kind: output, shape index: {1}]
  %5 = xla_tuple %s3, %s4
  %s6 = sld [smem:[#allocation0]]
  $region30: #{tpu_custom_call.1} parent=0
    _
  %s8 = ssub.s32 1, %s6
  %s9 = scalar_select 0, %s8, %s6
  $region1: #{tpu_custom_call.1} parent=0
    #allocation2 [shape = 'u8[8192]{0}', space=vmem, size = 0x2000, scoped, tag = 'output window, operand 0, single buffered']
    #allocation3 [shape = 's32[1]{0}', space=sflag, size = 0x4, scoped, tag = 'scoped memory for tpu_custom_call.1']
    #allocation4 [shape = 'u8[1024]{0}', space=vmem, size = 0x400, scoped, tag = 'output window, operand 1, single buffered']
    #allocation5 [shape = 's32[1]{0}', space=sflag, size = 0x4, scoped, tag = 'scoped memory for tpu_custom_call.1']
    %10 = vsyncpa [#allocation3], 0
    %11 = vsyncpa [#allocation5], 0
    // Predicated region
    $region2: #{tpu_custom_call.1} parent=1 // pred_check
      _
    $region3: #{tpu_custom_call.1} parent=1 // pred_check_branch
      %13 = sbr.rel (0) target = $region5
    $region4: #{tpu_custom_call.1} parent=1 // pred_region
      _
    $region5: #{tpu_custom_call.1} parent=1 // pred_fallthru
      _
    // Predicated region
    $region6: #{tpu_custom_call.1} parent=1 // pred_check
      _
    $region7: #{tpu_custom_call.1} parent=1 // pred_check_branch
      %15 = sbr.rel (0) target = $region9
    $region8: #{tpu_custom_call.1} parent=1 // pred_region
      _
    $region9: #{tpu_custom_call.1} parent=1 // pred_fallthru
      _
    // Predicated region
    $region10: #{tpu_custom_call.1} parent=1 // pred_check
      _
    $region11: #{tpu_custom_call.1} parent=1 // pred_check_branch
      %17 = sbr.rel (0) target = $region13
    $region12: #{tpu_custom_call.1} parent=1 // pred_region
      _
    $region13: #{tpu_custom_call.1} parent=1 // pred_fallthru
      _
    %v18 = vld [vmem:[%s0] sm:$0xff]
    %v19 = vld [vmem:[%s0 + $0x8] sm:$0xff]
    %v20 = vld [vmem:[%s1] sm:$0xff]
    %vm21 = vcmask 64512
    %v23 = vsel %vm21, %v18, 0
    %v26 = vsel %vm21, %v19, 0
    %28 = vmatprep.subr.mxu0 0.0
    %29 = vmatpush1.msra.mxu0 0.0
    %30 = vmatprep.subr.mxu0 0.0
    %31 = vmatpush1.msra.mxu0 0.0
    %32 = vmatprep.subr.mxu0 0.0
    %33 = vmatpush1.msra.mxu0 0.0
    %34 = vmatprep.subr.mxu0 0.0
    %35 = vmatpush1.msra.mxu0 0.0
    %36 = vmatprep.subr.mxu0 0.0
    %37 = vmatpush1.msra.mxu0 0.0
    %38 = vmatprep.subr.mxu0 0.0
    %39 = vmatpush1.msra.mxu0 0.0
    %40 = vmatprep.subr.mxu0 0.0
    %41 = vmatpush1.msra.mxu0 0.0
    %42 = vmatprep.subr.mxu0 0.0
    %43 = vmatpush1.msra.mxu0 0.0
    %44 = vmatprep.subr.mxu0 0.0
    %45 = vmatpush1.msra.mxu0 0.0
    %46 = vmatprep.subr.mxu0 0.0
    %47 = vmatpush1.msra.mxu0 0.0
    %48 = vmatprep.subr.mxu0 0.0
    %49 = vmatpush1.msra.mxu0 0.0
    %50 = vmatprep.subr.mxu0 0.0
    %51 = vmatpush1.msra.mxu0 0.0
    %52 = vmatprep.subr.mxu0 0.0
    %53 = vmatpush1.msra.mxu0 0.0
    %54 = vmatprep.subr.mxu0 0.0
    %55 = vmatpush1.msra.mxu0 0.0
    %56 = vmatprep.subr.mxu0 0.0
    %57 = vmatpush1.msra.mxu0 0.0
    %58 = vmatprep.subr.mxu0 0.0
    %59 = vmatpush1.msra.mxu0 %v20
    %60 = vmatprep.subr.mxu0 0.0
    %61 = vmatpush2.msra.mxu0 0.0
    %62 = vmatprep.subr.mxu0 0.0
    %63 = vmatpush2.msra.mxu0 0.0
    %64 = vmatprep.subr.mxu0 0.0
    %65 = vmatpush2.msra.mxu0 0.0
    %66 = vmatprep.subr.mxu0 0.0
    %67 = vmatpush2.msra.mxu0 0.0
    %68 = vmatprep.subr.mxu0 0.0
    %69 = vmatpush2.msra.mxu0 0.0
    %70 = vmatprep.subr.mxu0 0.0
    %71 = vmatpush2.msra.mxu0 0.0
    %72 = vmatprep.subr.mxu0 0.0
    %73 = vmatpush2.msra.mxu0 0.0
    %74 = vmatprep.subr.mxu0 0.0
    %75 = vmatpush2.msra.mxu0 0.0
    %76 = vmatprep.subr.mxu0 0.0
    %77 = vmatpush2.msra.mxu0 0.0
    %78 = vmatprep.subr.mxu0 0.0
    %79 = vmatpush2.msra.mxu0 0.0
    %80 = vmatprep.subr.mxu0 0.0
    %81 = vmatpush2.msra.mxu0 0.0
    %82 = vmatprep.subr.mxu0 0.0
    %83 = vmatpush2.msra.mxu0 0.0
    %84 = vmatprep.subr.mxu0 0.0
    %85 = vmatpush2.msra.mxu0 0.0
    %86 = vmatprep.subr.mxu0 0.0
    %87 = vmatpush2.msra.mxu0 0.0
    %88 = vmatprep.subr.mxu0 0.0
    %89 = vmatpush2.msra.mxu0 0.0
    %90 = vmatprep.subr.mxu0 0.0
    %91 = vmatpush2.msra.mxu0 0.0
    %92 = vmatprep.mubr.f32.mxu0 0.0
    %93 = vmatmul.mubr.f32.gmra.mxu0 %v23
    %v94 = vpop.f32.mrf.mxu0
    %v95 = vadd.f32 0.0, %v94
    %v96 = vpop.f32.mrf.mxu0
    %97 = vmatprep.mubr.f32.mxu0 0.0
    %98 = vmatmul.mubr.f32.gmra.mxu0 %v26
    %v99 = vpop.f32.mrf.mxu0
    %v100 = vadd.f32 0.0, %v99
    %v101 = vpop.f32.mrf.mxu0
    %102 = vdwg.mxu0
    %vm103 = vcmask 146432
    %104 = vst.msk [vmem:[#allocation2] sm:$0xff] %vm103, %v95
    %105 = vst.msk [vmem:[#allocation2 + $0x8] sm:$0xff] %vm103, %v100
    %v106 = vld [vmem:[%s2] sm:$0x3]
    %vm107 = vcmask 130048
    %v109 = vsel %vm107, %v106, 0
    %v112 = vsel %vm107, %v95, 0
    %v115 = vsel %vm107, %v100, 0
    %117 = vmatprep.subr.mxu0 0.0
    %118 = vmatpush1.xpose.msra.mxu0 0.0
    %119 = vmatprep.subr.mxu0 0.0
    %120 = vmatpush1.xpose.msra.mxu0 0.0
    %121 = vmatprep.subr.mxu0 0.0
    %122 = vmatpush1.xpose.msra.mxu0 0.0
    %123 = vmatprep.subr.mxu0 0.0
    %124 = vmatpush1.xpose.msra.mxu0 0.0
    %125 = vmatprep.subr.mxu0 0.0
    %126 = vmatpush1.xpose.msra.mxu0 0.0
    %127 = vmatprep.subr.mxu0 0.0
    %128 = vmatpush1.xpose.msra.mxu0 0.0
    %129 = vmatprep.subr.mxu0 0.0
    %130 = vmatpush1.xpose.msra.mxu0 0.0
    %131 = vmatprep.subr.mxu0 0.0
    %132 = vmatpush1.xpose.msra.mxu0 0.0
    %133 = vmatprep.subr.mxu0 0.0
    %134 = vmatpush1.xpose.msra.mxu0 0.0
    %135 = vmatprep.subr.mxu0 0.0
    %136 = vmatpush1.xpose.msra.mxu0 0.0
    %137 = vmatprep.subr.mxu0 0.0
    %138 = vmatpush1.xpose.msra.mxu0 0.0
    %139 = vmatprep.subr.mxu0 0.0
    %140 = vmatpush1.xpose.msra.mxu0 0.0
    %141 = vmatprep.subr.mxu0 0.0
    %142 = vmatpush1.xpose.msra.mxu0 0.0
    %143 = vmatprep.subr.mxu0 0.0
    %144 = vmatpush1.xpose.msra.mxu0 0.0
    %145 = vmatprep.subr.mxu0 0.0
    %146 = vmatpush1.xpose.msra.mxu0 %v115
    %147 = vmatprep.subr.mxu0 0.0
    %148 = vmatpush1.xpose.msra.mxu0 %v112
    %149 = vmatprep.subr.mxu0 0.0
    %150 = vmatpush2.xpose.msra.mxu0 0.0
    %151 = vmatprep.subr.mxu0 0.0
    %152 = vmatpush2.xpose.msra.mxu0 0.0
    %153 = vmatprep.subr.mxu0 0.0
    %154 = vmatpush2.xpose.msra.mxu0 0.0
    %155 = vmatprep.subr.mxu0 0.0
    %156 = vmatpush2.xpose.msra.mxu0 0.0
    %157 = vmatprep.subr.mxu0 0.0
    %158 = vmatpush2.xpose.msra.mxu0 0.0
    %159 = vmatprep.subr.mxu0 0.0
    %160 = vmatpush2.xpose.msra.mxu0 0.0
    %161 = vmatprep.subr.mxu0 0.0
    %162 = vmatpush2.xpose.msra.mxu0 0.0
    %163 = vmatprep.subr.mxu0 0.0
    %164 = vmatpush2.xpose.msra.mxu0 0.0
    %165 = vmatprep.subr.mxu0 0.0
    %166 = vmatpush2.xpose.msra.mxu0 0.0
    %167 = vmatprep.subr.mxu0 0.0
    %168 = vmatpush2.xpose.msra.mxu0 0.0
    %169 = vmatprep.subr.mxu0 0.0
    %170 = vmatpush2.xpose.msra.mxu0 0.0
    %171 = vmatprep.subr.mxu0 0.0
    %172 = vmatpush2.xpose.msra.mxu0 0.0
    %173 = vmatprep.subr.mxu0 0.0
    %174 = vmatpush2.xpose.msra.mxu0 0.0
    %175 = vmatprep.subr.mxu0 0.0
    %176 = vmatpush2.xpose.msra.mxu0 0.0
    %177 = vmatprep.subr.mxu0 0.0
    %178 = vmatpush2.xpose.msra.mxu0 0.0
    %179 = vmatprep.subr.mxu0 0.0
    %180 = vmatpush2.xpose.msra.mxu0 0.0
    %181 = vmatprep.mubr.f32.mxu0 0.0
    %182 = vmatmul.mubr.f32.gmra.mxu0 %v109
    %v183 = vpop.f32.mrf.mxu0
    %v184 = vadd.f32 0.0, %v183
    %v185 = vpop.f32.mrf.mxu0
    %186 = vdwg.mxu0
    %vm187 = vcmask 123904
    %188 = vst.msk [vmem:[#allocation4] sm:$0x3] %vm187, %v184
    // Predicated region
    $region14: #{tpu_custom_call.1} parent=1 // pred_check
      _
    $region15: #{tpu_custom_call.1} parent=1 // pred_check_branch
      %190 = sbr.rel (0) target = $region17
    $region16: #{tpu_custom_call.1} parent=1 // pred_region
      %s192 = ssub.s32 256, 256
      %193 = vsyncadd [#allocation3], %s192
      %s194 = sshll.u32 [#allocation2], 4
      %s195 = int_to_ptr.vmem [resolvable:$true] %s194
      %200 = dma.vmem_to_hbm [thread:$0]  %s195, 256, %s3, [#allocation3], 128, 128, 8
    $region17: #{tpu_custom_call.1} parent=1 // pred_fallthru
      _
    // Predicated region
    $region18: #{tpu_custom_call.1} parent=1 // pred_check
      _
    $region19: #{tpu_custom_call.1} parent=1 // pred_check_branch
      %202 = sbr.rel (0) target = $region21
    $region20: #{tpu_custom_call.1} parent=1 // pred_region
      %s204 = ssub.s32 32, 32
      %205 = vsyncadd [#allocation5], %s204
      %s207 = sshll.u32 [#allocation4], 4
      %s208 = int_to_ptr.vmem [resolvable:$true] %s207
      %210 = dma.vmem_to_hbm [thread:$0]  %s208, 32, %s4, [#allocation5]
    $region21: #{tpu_custom_call.1} parent=1 // pred_fallthru
      _
    // Predicated region
    $region22: #{tpu_custom_call.1} parent=1 // pred_check
      _
    $region23: #{tpu_custom_call.1} parent=1 // pred_check_branch
      %212 = sbr.rel (0) target = $region25
    $region24: #{tpu_custom_call.1} parent=1 // pred_region
      %213 = dma.done [#allocation3], 256
    $region25: #{tpu_custom_call.1} parent=1 // pred_fallthru
      _
    // Predicated region
    $region26: #{tpu_custom_call.1} parent=1 // pred_check
      _
    $region27: #{tpu_custom_call.1} parent=1 // pred_check_branch
      %215 = sbr.rel (0) target = $region29
    $region28: #{tpu_custom_call.1} parent=1 // pred_region
      %216 = dma.done [#allocation5], 32
    $region29: #{tpu_custom_call.1} parent=1 // pred_fallthru
      _
    %217 = vsyncpa [#allocation3], 1
    %218 = vsyncpa [#allocation5], 1

</llo_original>
